<compile_context>
chip_gen: v7x
topology: tpu7x:2x2x1
jax: 0.10.0
libtpu: 0.0.40
codegen_flags: <defaults>
</compile_context>

<pallas_src>
import math

import jax
import jax.numpy as jnp
from jax import lax
from jax.experimental import pallas as pl
from jax.experimental.pallas import tpu as pltpu


def _tile(n, pref=128):
    """Use a 128 tile when it divides n, otherwise fall back to the full extent
    (so blocks are either 8/128-aligned or equal to the full dim)."""
    return pref if n % pref == 0 else n


# ---------------------------------------------------------------------------
# Kernel A: fused QKV projection -> head-major Q/K/V (B, H, T, D), bf16.
# ---------------------------------------------------------------------------
def _make_qkv_kernel(scale):
    def kernel(x_ref, wq_ref, wk_ref, wv_ref, bq_ref, bk_ref, bv_ref,
               q_ref, k_ref, v_ref):
        xb = x_ref[0].astype(jnp.bfloat16)                                   # (tt, C)
        q = jnp.dot(xb, wq_ref[0], preferred_element_type=jnp.float32) + bq_ref[0]
        k = jnp.dot(xb, wk_ref[0], preferred_element_type=jnp.float32) + bk_ref[0]
        v = jnp.dot(xb, wv_ref[0], preferred_element_type=jnp.float32) + bv_ref[0]
        q_ref[0, 0] = (q * scale).astype(q_ref.dtype)   # fold 1/sqrt(D) into Q
        k_ref[0, 0] = k.astype(k_ref.dtype)
        v_ref[0, 0] = v.astype(v_ref.dtype)
    return kernel


# ---------------------------------------------------------------------------
# Kernel B: flash attention (online softmax, causal tile skipping) fused with
# the per-head output projection accumulation.
# ---------------------------------------------------------------------------
def _make_attn_proj_kernel(tq, tk):
    def kernel(q_ref, k_ref, v_ref, wp_ref, bp_ref, o_ref,
               m_scr, l_scr, acc_scr, out_scr):
        i = pl.program_id(1)          # query tile
        h = pl.program_id(2)          # head
        j = pl.program_id(3)          # kv tile
        nh = pl.num_programs(2)
        nj = pl.num_programs(3)

        # --- init per-(q-tile, head) online-softmax state ---
        @pl.when(j == 0)
        def _():
            m_scr[...] = jnp.full(m_scr.shape, -jnp.inf, jnp.float32)
            l_scr[...] = jnp.zeros(l_scr.shape, jnp.float32)
            acc_scr[...] = jnp.zeros(acc_scr.shape, jnp.float32)

        # --- init output-projection accumulator once per (batch, q-tile) ---
        @pl.when((h == 0) & (j == 0))
        def _():
            out_scr[...] = jnp.broadcast_to(bp_ref[...], out_scr.shape).astype(jnp.float32)

        # --- skip kv tiles that lie entirely above the causal diagonal ---
        not_skipped = (j * tk) <= (i * tq + (tq - 1))

        @pl.when(not_skipped)
        def _():
            qh = q_ref[0, 0]                                   # (tq, D) bf16 (pre-scaled)
            kh = k_ref[0, 0]                                   # (tk, D) bf16
            # q @ k^T without an explicit transpose: contract dim 1 of both.
            s = lax.dot_general(qh, kh, (((1,), (1,)), ((), ())),
                                preferred_element_type=jnp.float32)   # (tq, tk) f32
            row = lax.broadcasted_iota(jnp.int32, (tq, tk), 0) + i * tq
            col = lax.broadcasted_iota(jnp.int32, (tq, tk), 1) + j * tk
            s = jnp.where(col <= row, s, jnp.float32(-1e30))

            m_prev = m_scr[...]
            m_new = jnp.maximum(m_prev, jnp.max(s, axis=-1, keepdims=True))
            alpha = jnp.exp(m_prev - m_new)
            p = jnp.exp(s - m_new)                             # f32 softmax numerator
            l_scr[...] = alpha * l_scr[...] + jnp.sum(p, axis=-1, keepdims=True)
            acc_scr[...] = alpha * acc_scr[...] + jnp.dot(
                p.astype(jnp.bfloat16), v_ref[0, 0],
                preferred_element_type=jnp.float32)
            m_scr[...] = m_new

        is_last_j = j == nj - 1

        # --- finalize this head: normalize, project, accumulate ---
        @pl.when(is_last_j)
        def _():
            y_h = acc_scr[...] * pl.reciprocal(l_scr[...], approx=True)       # (tq, D) f32
            out_scr[...] += jnp.dot(y_h.astype(jnp.bfloat16), wp_ref[0],
                                    preferred_element_type=jnp.float32)       # (tq, C)

        # --- after the last head, write the output tile ---
        @pl.when(is_last_j & (h == nh - 1))
        def _():
            o_ref[0] = out_scr[...].astype(o_ref.dtype)

    return kernel


def causal_self_attention(x, w_qkv, b_qkv, w_proj, b_proj, n_head):
    """x: (B, T, C) f32. w_qkv: (C, 3C) (x @ W + b layout). b_qkv: (3C,).
    w_proj: (C, C). b_proj: (C,)."""
    B, T, C = x.shape
    H = n_head
    assert C % H == 0
    D = C // H

    tt = _tile(T)     # projection t-tile
    tq = _tile(T)     # query tile
    tk = _tile(T)     # kv tile

    f32, bf16 = jnp.float32, jnp.bfloat16

    # Head-major weight layouts so heads are selected by index_map, not lane slicing.
    w_q = w_qkv[:, 0 * C:1 * C].reshape(C, H, D).transpose(1, 0, 2).astype(bf16)  # (H, C, D)
    w_k = w_qkv[:, 1 * C:2 * C].reshape(C, H, D).transpose(1, 0, 2).astype(bf16)
    w_v = w_qkv[:, 2 * C:3 * C].reshape(C, H, D).transpose(1, 0, 2).astype(bf16)
    b_q = b_qkv[0 * C:1 * C].reshape(H, 1, D).astype(f32)
    b_k = b_qkv[1 * C:2 * C].reshape(H, 1, D).astype(f32)
    b_v = b_qkv[2 * C:3 * C].reshape(H, 1, D).astype(f32)
    w_p = w_proj.reshape(H, D, C).astype(bf16)       # rows h*D:(h+1)*D -> head h
    b_p = b_proj.reshape(1, C).astype(f32)

    scale = 1.0 / math.sqrt(D)

    # ---------------- Kernel A: QKV projection ----------------
    qkv_cost = pl.CostEstimate(
        flops=int(2 * B * T * C * 3 * C),
        transcendentals=0,
        bytes_accessed=int(B * T * C * 4 + 3 * C * C * 2 + 3 * B * H * T * D * 2),
    )
    q_hm, k_hm, v_hm = pl.pallas_call(
        _make_qkv_kernel(scale),
        out_shape=(jax.ShapeDtypeStruct((B, H, T, D), bf16),) * 3,
        grid_spec=pltpu.PrefetchScalarGridSpec(
            num_scalar_prefetch=0,
            grid=(B, T // tt, H),
            in_specs=[
                pl.BlockSpec((1, tt, C), lambda b, t, h: (b, t, 0)),    # x
                pl.BlockSpec((1, C, D), lambda b, t, h: (h, 0, 0)),     # w_q (per head)
                pl.BlockSpec((1, C, D), lambda b, t, h: (h, 0, 0)),     # w_k
                pl.BlockSpec((1, C, D), lambda b, t, h: (h, 0, 0)),     # w_v
                pl.BlockSpec((1, 1, D), lambda b, t, h: (h, 0, 0)),     # b_q
                pl.BlockSpec((1, 1, D), lambda b, t, h: (h, 0, 0)),     # b_k
                pl.BlockSpec((1, 1, D), lambda b, t, h: (h, 0, 0)),     # b_v
            ],
            out_specs=(
                pl.BlockSpec((1, 1, tt, D), lambda b, t, h: (b, h, t, 0)),
                pl.BlockSpec((1, 1, tt, D), lambda b, t, h: (b, h, t, 0)),
                pl.BlockSpec((1, 1, tt, D), lambda b, t, h: (b, h, t, 0)),
            ),
        ),
        compiler_params=pltpu.CompilerParams(
            dimension_semantics=("parallel", "parallel", "parallel")),
        cost_estimate=qkv_cost,
    )(x, w_q, w_k, w_v, b_q, b_k, b_v)

    # ------- Kernel B: flash attention + fused output projection -------
    attn_cost = pl.CostEstimate(
        flops=int(4 * B * H * T * T * D + 2 * B * T * C * C),
        transcendentals=int(B * H * T * T),
        bytes_accessed=int(B * H * T * D * 2 * (1 + 2 * (T // tq))
                           + B * (T // tq) * H * D * C * 2
                           + B * T * C * 4),
    )
    out = pl.pallas_call(
        _make_attn_proj_kernel(tq, tk),
        out_shape=jax.ShapeDtypeStruct((B, T, C), x.dtype),
        grid_spec=pltpu.PrefetchScalarGridSpec(
            num_scalar_prefetch=0,
            grid=(B, T // tq, H, T // tk),
            in_specs=[
                pl.BlockSpec((1, 1, tq, D), lambda b, i, h, j: (b, h, i, 0)),  # q
                pl.BlockSpec((1, 1, tk, D), lambda b, i, h, j: (b, h, j, 0)),  # k
                pl.BlockSpec((1, 1, tk, D), lambda b, i, h, j: (b, h, j, 0)),  # v
                pl.BlockSpec((1, D, C), lambda b, i, h, j: (h, 0, 0)),         # w_proj (per head)
                pl.BlockSpec((1, C), lambda b, i, h, j: (0, 0)),               # b_proj
            ],
            out_specs=pl.BlockSpec((1, tq, C), lambda b, i, h, j: (b, i, 0)),
            scratch_shapes=[
                pltpu.VMEM((tq, 1), jnp.float32),   # m (running max)
                pltpu.VMEM((tq, 1), jnp.float32),   # l (running denom)
                pltpu.VMEM((tq, D), jnp.float32),   # attention accumulator (per head)
                pltpu.VMEM((tq, C), jnp.float32),   # output-projection accumulator
            ],
        ),
        compiler_params=pltpu.CompilerParams(
            dimension_semantics=("parallel", "parallel", "arbitrary", "arbitrary")),
        cost_estimate=attn_cost,
    )(q_hm, k_hm, v_hm, w_p, b_p)

    return out


def _reference(x, w_qkv, b_qkv, w_proj, b_proj, n_head):
    B, T, C = x.shape
    D = C // n_head
    qkv = jnp.einsum("btc,cd->btd", x, w_qkv) + b_qkv
    q, k, v = jnp.split(qkv, 3, axis=-1)
    q = q.reshape(B, T, n_head, D).transpose(0, 2, 1, 3)
    k = k.reshape(B, T, n_head, D).transpose(0, 2, 1, 3)
    v = v.reshape(B, T, n_head, D).transpose(0, 2, 1, 3)
    s = jnp.einsum("bhtd,bhsd->bhts", q, k) / math.sqrt(D)
    mask = jnp.tril(jnp.ones((T, T), dtype=bool))
    s = jnp.where(mask[None, None], s, -1e30)
    att = jax.nn.softmax(s, axis=-1)
    y = jnp.einsum("bhts,bhsd->bhtd", att, v)
    y = y.transpose(0, 2, 1, 3).reshape(B, T, C)
    return jnp.einsum("btc,cd->btd", y, w_proj) + b_proj


if __name__ == "__main__":
    # Small config consistent with the module: B=2, T(block_size)=8, C(n_embd)=32, n_head=4.
    B, T, C, n_head = 2, 8, 32, 4

    key = jax.random.PRNGKey(0)
    kx, k1, k2, k3, k4 = jax.random.split(key, 5)

    x = jax.random.normal(kx, (B, T, C), dtype=jnp.float32)
    # Deterministic parameter init (nanoGPT-ish 0.02 std), stored (in, out).
    w_qkv = 0.02 * jax.random.normal(k1, (C, 3 * C), dtype=jnp.float32)
    b_qkv = 0.02 * jax.random.normal(k2, (3 * C,), dtype=jnp.float32)
    w_proj = 0.02 * jax.random.normal(k3, (C, C), dtype=jnp.float32)
    b_proj = 0.02 * jax.random.normal(k4, (C,), dtype=jnp.float32)

    out = causal_self_attention(x, w_qkv, b_qkv, w_proj, b_proj, n_head)
    out = jax.block_until_ready(out)

    ref = _reference(x, w_qkv, b_qkv, w_proj, b_proj, n_head)
    assert out.shape == (B, T, C)
    # bf16 MXU operands + approximate reciprocal => looser tolerance than pure f32.
    assert jnp.allclose(out, ref, atol=1e-2, rtol=1e-2), "mismatch vs reference"

    print("KERNEL_OK")
</pallas_src>

<mosaic_0001>
module attributes {stable_mosaic.version = 11 : i64} {
  func.func @kernel(%arg0: i32, %arg1: i32, %arg2: i32, %arg3: memref<1x8x32xf32, #tpu.memory_space<vmem>>, %arg4: memref<1x32x8xbf16, #tpu.memory_space<vmem>>, %arg5: memref<1x32x8xbf16, #tpu.memory_space<vmem>>, %arg6: memref<1x32x8xbf16, #tpu.memory_space<vmem>>, %arg7: memref<1x1x8xf32, #tpu.memory_space<vmem>>, %arg8: memref<1x1x8xf32, #tpu.memory_space<vmem>>, %arg9: memref<1x1x8xf32, #tpu.memory_space<vmem>>, %arg10: memref<1x1x8x8xbf16, #tpu.memory_space<vmem>>, %arg11: memref<1x1x8x8xbf16, #tpu.memory_space<vmem>>, %arg12: memref<1x1x8x8xbf16, #tpu.memory_space<vmem>>) attributes {dimension_semantics = [#tpu.dimension_semantics<parallel>, #tpu.dimension_semantics<parallel>, #tpu.dimension_semantics<parallel>], iteration_bounds = array<i64: 2, 1, 4>, scalar_prefetch = 0 : i64, scratch_operands = 0 : i64, tpu.core_type = #tpu.core_type<tc>, window_params = [{transform_indices = @transform_0, window_bounds = array<i64: 1, 8, 32>}, {transform_indices = @transform_1, window_bounds = array<i64: 1, 32, 8>}, {transform_indices = @transform_2, window_bounds = array<i64: 1, 32, 8>}, {transform_indices = @transform_3, window_bounds = array<i64: 1, 32, 8>}, {transform_indices = @transform_4, window_bounds = array<i64: 1, 1, 8>}, {transform_indices = @transform_5, window_bounds = array<i64: 1, 1, 8>}, {transform_indices = @transform_6, window_bounds = array<i64: 1, 1, 8>}, {transform_indices = @transform_7, window_bounds = array<i64: 1, 1, 8, 8>}, {transform_indices = @transform_8, window_bounds = array<i64: 1, 1, 8, 8>}, {transform_indices = @transform_9, window_bounds = array<i64: 1, 1, 8, 8>}]} {
    %c0 = arith.constant 0 : index
    %c0_0 = arith.constant 0 : index
    %c0_1 = arith.constant 0 : index
    %0 = vector.load %arg3[%c0, %c0_0, %c0_1] : memref<1x8x32xf32, #tpu.memory_space<vmem>>, vector<1x8x32xf32>
    %1 = vector.shape_cast %0 : vector<1x8x32xf32> to vector<8x32xf32>
    %2 = arith.truncf %1 : vector<8x32xf32> to vector<8x32xbf16>
    %c0_2 = arith.constant 0 : index
    %c0_3 = arith.constant 0 : index
    %c0_4 = arith.constant 0 : index
    %3 = vector.load %arg4[%c0_2, %c0_3, %c0_4] : memref<1x32x8xbf16, #tpu.memory_space<vmem>>, vector<1x32x8xbf16>
    %4 = vector.shape_cast %3 : vector<1x32x8xbf16> to vector<32x8xbf16>
    %cst = arith.constant dense<0.000000e+00> : vector<8x8xf32>
    %5 = tpu.matmul %2, %4, %cst {dimension_numbers = #tpu.dot_dimension_numbers<[1], [0], [0], [1], [0, 0, 1, 1], [], []>} : vector<8x32xbf16>, vector<32x8xbf16>, vector<8x8xf32> -> vector<8x8xf32>
    %c0_5 = arith.constant 0 : index
    %c0_6 = arith.constant 0 : index
    %c0_7 = arith.constant 0 : index
    %6 = vector.load %arg7[%c0_5, %c0_6, %c0_7] : memref<1x1x8xf32, #tpu.memory_space<vmem>>, vector<1x1x8xf32>
    %7 = vector.shape_cast %6 : vector<1x1x8xf32> to vector<1x8xf32>
    %8 = vector.broadcast %7 : vector<1x8xf32> to vector<8x8xf32>
    %9 = arith.addf %5, %8 : vector<8x8xf32>
    %c0_8 = arith.constant 0 : index
    %c0_9 = arith.constant 0 : index
    %c0_10 = arith.constant 0 : index
    %10 = vector.load %arg5[%c0_8, %c0_9, %c0_10] : memref<1x32x8xbf16, #tpu.memory_space<vmem>>, vector<1x32x8xbf16>
    %11 = vector.shape_cast %10 : vector<1x32x8xbf16> to vector<32x8xbf16>
    %cst_11 = arith.constant dense<0.000000e+00> : vector<8x8xf32>
    %12 = tpu.matmul %2, %11, %cst_11 {dimension_numbers = #tpu.dot_dimension_numbers<[1], [0], [0], [1], [0, 0, 1, 1], [], []>} : vector<8x32xbf16>, vector<32x8xbf16>, vector<8x8xf32> -> vector<8x8xf32>
    %c0_12 = arith.constant 0 : index
    %c0_13 = arith.constant 0 : index
    %c0_14 = arith.constant 0 : index
    %13 = vector.load %arg8[%c0_12, %c0_13, %c0_14] : memref<1x1x8xf32, #tpu.memory_space<vmem>>, vector<1x1x8xf32>
    %14 = vector.shape_cast %13 : vector<1x1x8xf32> to vector<1x8xf32>
    %15 = vector.broadcast %14 : vector<1x8xf32> to vector<8x8xf32>
    %16 = arith.addf %12, %15 : vector<8x8xf32>
    %c0_15 = arith.constant 0 : index
    %c0_16 = arith.constant 0 : index
    %c0_17 = arith.constant 0 : index
    %17 = vector.load %arg6[%c0_15, %c0_16, %c0_17] : memref<1x32x8xbf16, #tpu.memory_space<vmem>>, vector<1x32x8xbf16>
    %18 = vector.shape_cast %17 : vector<1x32x8xbf16> to vector<32x8xbf16>
    %cst_18 = arith.constant dense<0.000000e+00> : vector<8x8xf32>
    %19 = tpu.matmul %2, %18, %cst_18 {dimension_numbers = #tpu.dot_dimension_numbers<[1], [0], [0], [1], [0, 0, 1, 1], [], []>} : vector<8x32xbf16>, vector<32x8xbf16>, vector<8x8xf32> -> vector<8x8xf32>
    %c0_19 = arith.constant 0 : index
    %c0_20 = arith.constant 0 : index
    %c0_21 = arith.constant 0 : index
    %20 = vector.load %arg9[%c0_19, %c0_20, %c0_21] : memref<1x1x8xf32, #tpu.memory_space<vmem>>, vector<1x1x8xf32>
    %21 = vector.shape_cast %20 : vector<1x1x8xf32> to vector<1x8xf32>
    %22 = vector.broadcast %21 : vector<1x8xf32> to vector<8x8xf32>
    %23 = arith.addf %19, %22 : vector<8x8xf32>
    %cst_22 = arith.constant 0.353553385 : f32
    %24 = vector.broadcast %cst_22 : f32 to vector<8x8xf32>
    %25 = arith.mulf %9, %24 : vector<8x8xf32>
    %26 = arith.truncf %25 : vector<8x8xf32> to vector<8x8xbf16>
    %c0_23 = arith.constant 0 : index
    %c0_24 = arith.constant 0 : index
    %c0_25 = arith.constant 0 : index
    %c0_26 = arith.constant 0 : index
    %27 = vector.load %arg10[%c0_23, %c0_24, %c0_25, %c0_26] : memref<1x1x8x8xbf16, #tpu.memory_space<vmem>>, vector<1x1x8x8xbf16>
    %28 = vector.shape_cast %27 : vector<1x1x8x8xbf16> to vector<8x8xbf16>
    %29 = vector.shape_cast %26 : vector<8x8xbf16> to vector<1x1x8x8xbf16>
    tpu.vector_store %arg10[%c0_23, %c0_24, %c0_25, %c0_26], %29 {strides = array<i32>} : memref<1x1x8x8xbf16, #tpu.memory_space<vmem>>, vector<1x1x8x8xbf16>,
    %30 = arith.truncf %16 : vector<8x8xf32> to vector<8x8xbf16>
    %c0_27 = arith.constant 0 : index
    %c0_28 = arith.constant 0 : index
    %c0_29 = arith.constant 0 : index
    %c0_30 = arith.constant 0 : index
    %31 = vector.load %arg11[%c0_27, %c0_28, %c0_29, %c0_30] : memref<1x1x8x8xbf16, #tpu.memory_space<vmem>>, vector<1x1x8x8xbf16>
    %32 = vector.shape_cast %31 : vector<1x1x8x8xbf16> to vector<8x8xbf16>
    %33 = vector.shape_cast %30 : vector<8x8xbf16> to vector<1x1x8x8xbf16>
    tpu.vector_store %arg11[%c0_27, %c0_28, %c0_29, %c0_30], %33 {strides = array<i32>} : memref<1x1x8x8xbf16, #tpu.memory_space<vmem>>, vector<1x1x8x8xbf16>,
    %34 = arith.truncf %23 : vector<8x8xf32> to vector<8x8xbf16>
    %c0_31 = arith.constant 0 : index
    %c0_32 = arith.constant 0 : index
    %c0_33 = arith.constant 0 : index
    %c0_34 = arith.constant 0 : index
    %35 = vector.load %arg12[%c0_31, %c0_32, %c0_33, %c0_34] : memref<1x1x8x8xbf16, #tpu.memory_space<vmem>>, vector<1x1x8x8xbf16>
    %36 = vector.shape_cast %35 : vector<1x1x8x8xbf16> to vector<8x8xbf16>
    %37 = vector.shape_cast %34 : vector<8x8xbf16> to vector<1x1x8x8xbf16>
    tpu.vector_store %arg12[%c0_31, %c0_32, %c0_33, %c0_34], %37 {strides = array<i32>} : memref<1x1x8x8xbf16, #tpu.memory_space<vmem>>, vector<1x1x8x8xbf16>,
    return
  }
  func.func @transform_0(%arg0: i32, %arg1: i32, %arg2: i32) -> (i32, i32, i32) {
    %c0_i32 = arith.constant 0 : i32
    %c0_i32_0 = arith.constant 0 : i32
    return %arg0, %arg1, %c0_i32 : i32, i32, i32
  }
  func.func @transform_1(%arg0: i32, %arg1: i32, %arg2: i32) -> (i32, i32, i32) {
    %c0_i32 = arith.constant 0 : i32
    %c0_i32_0 = arith.constant 0 : i32
    %c0_i32_1 = arith.constant 0 : i32
    return %arg2, %c0_i32, %c0_i32_0 : i32, i32, i32
  }
  func.func @transform_2(%arg0: i32, %arg1: i32, %arg2: i32) -> (i32, i32, i32) {
    %c0_i32 = arith.constant 0 : i32
    %c0_i32_0 = arith.constant 0 : i32
    %c0_i32_1 = arith.constant 0 : i32
    return %arg2, %c0_i32, %c0_i32_0 : i32, i32, i32
  }
  func.func @transform_3(%arg0: i32, %arg1: i32, %arg2: i32) -> (i32, i32, i32) {
    %c0_i32 = arith.constant 0 : i32
    %c0_i32_0 = arith.constant 0 : i32
    %c0_i32_1 = arith.constant 0 : i32
    return %arg2, %c0_i32, %c0_i32_0 : i32, i32, i32
  }
  func.func @transform_4(%arg0: i32, %arg1: i32, %arg2: i32) -> (i32, i32, i32) {
    %c0_i32 = arith.constant 0 : i32
    %c0_i32_0 = arith.constant 0 : i32
    %c0_i32_1 = arith.constant 0 : i32
    return %arg2, %c0_i32, %c0_i32_0 : i32, i32, i32
  }
  func.func @transform_5(%arg0: i32, %arg1: i32, %arg2: i32) -> (i32, i32, i32) {
    %c0_i32 = arith.constant 0 : i32
    %c0_i32_0 = arith.constant 0 : i32
    %c0_i32_1 = arith.constant 0 : i32
    return %arg2, %c0_i32, %c0_i32_0 : i32, i32, i32
  }
  func.func @transform_6(%arg0: i32, %arg1: i32, %arg2: i32) -> (i32, i32, i32) {
    %c0_i32 = arith.constant 0 : i32
    %c0_i32_0 = arith.constant 0 : i32
    %c0_i32_1 = arith.constant 0 : i32
    return %arg2, %c0_i32, %c0_i32_0 : i32, i32, i32
  }
  func.func @transform_7(%arg0: i32, %arg1: i32, %arg2: i32) -> (i32, i32, i32, i32) {
    %c0_i32 = arith.constant 0 : i32
    %c0_i32_0 = arith.constant 0 : i32
    return %arg0, %arg2, %arg1, %c0_i32 : i32, i32, i32, i32
  }
  func.func @transform_8(%arg0: i32, %arg1: i32, %arg2: i32) -> (i32, i32, i32, i32) {
    %c0_i32 = arith.constant 0 : i32
    %c0_i32_0 = arith.constant 0 : i32
    return %arg0, %arg2, %arg1, %c0_i32 : i32, i32, i32, i32
  }
  func.func @transform_9(%arg0: i32, %arg1: i32, %arg2: i32) -> (i32, i32, i32, i32) {
    %c0_i32 = arith.constant 0 : i32
    %c0_i32_0 = arith.constant 0 : i32
    return %arg0, %arg2, %arg1, %c0_i32 : i32, i32, i32, i32
  }
}

</mosaic_0001>

<llo_original>
// kernel: tpu_custom_call.1
$region0: #{tpu_custom_call.1}
  #allocation0 [shape = 'u32[]', space=smem, size = 0x4, offset = 0x4, fixed_abs, tag = 'smem constant byte address 0x4 - core index']
  #allocation1 [shape = 'u32[144,128]{1,0:T(1,128)}', space=vmem, size = 0x12000, scoped, tag = 'internal scratch']
  %s0 = inlined_call_operand.vmem [shape: f32[2,8,32], index: 0, kind: input, shape index: {}]
  %s1 = inlined_call_operand.vmem [shape: bf16[4,32,8], index: 1, kind: input, shape index: {}]
  %s2 = inlined_call_operand.vmem [shape: bf16[4,32,8], index: 2, kind: input, shape index: {}]
  %s3 = inlined_call_operand.vmem [shape: bf16[4,32,8], index: 3, kind: input, shape index: {}]
  %s4 = inlined_call_operand.vmem [shape: f32[4,1,8], index: 4, kind: input, shape index: {}]
  %s5 = inlined_call_operand.vmem [shape: f32[4,1,8], index: 5, kind: input, shape index: {}]
  %s6 = inlined_call_operand.vmem [shape: f32[4,1,8], index: 6, kind: input, shape index: {}]
  %s7 = inlined_call_operand.hbm [shape: bf16[2,4,8,8], index: 7, kind: output, shape index: {0}]
  %s8 = inlined_call_operand.hbm [shape: bf16[2,4,8,8], index: 8, kind: output, shape index: {1}]
  %s9 = inlined_call_operand.hbm [shape: bf16[2,4,8,8], index: 9, kind: output, shape index: {2}]
  %10 = xla_tuple %s7, %s8, %s9
  %s11 = sld [smem:[#allocation0]]
  $region77: #{tpu_custom_call.1} parent=0
    _
  %s13 = ssub.s32 1, %s11
  %s14 = scalar_select 0, %s13, %s11
  $region1: #{tpu_custom_call.1} parent=0
    #allocation2 [shape = 'u8[4096]{0}', space=vmem, size = 0x1000, scoped, tag = 'output window, operand 0']
    #allocation3 [shape = 's32[2]{0}', space=sflag, size = 0x8, scoped, tag = 'scoped memory for tpu_custom_call.1']
    #allocation4 [shape = 'u8[4096]{0}', space=vmem, size = 0x1000, scoped, tag = 'output window, operand 1']
    #allocation5 [shape = 's32[2]{0}', space=sflag, size = 0x8, scoped, tag = 'scoped memory for tpu_custom_call.1']
    #allocation6 [shape = 'u8[4096]{0}', space=vmem, size = 0x1000, scoped, tag = 'output window, operand 2']
    %15 = vsyncpa [#allocation3], 0
    %s16 = scalar_lea.sflag [#allocation3], 1
    %17 = vsyncpa %s16, 0
    %18 = vsyncpa [#allocation5], 0
    %s19 = scalar_lea.sflag [#allocation5], 1
    %20 = vsyncpa %s19, 0
    loop: start=0, step=1, limit=10
    $region2: #{tpu_custom_call.1} parent=1 // loop_pre_header
      _
    $region3: #{tpu_custom_call.1} parent=1 // loop_header
      %s22 = sphi 0, %s26
      %p23 = scmp.ge.s32.totalorder %s22, 10
      %s29 = sphi 0, %s48
      %s30 = sphi 0, %s44
      %s31 = sphi 0, %s40
      %s32 = sphi 0, %s29
      %s33 = sphi 0, %s30
      %s34 = sphi 0, %s31
      %s35 = sphi 0, %s32
      %s36 = sphi 0, %s33
      %s37 = sphi 0, %s34
      %s53 = sphi 0, %s55
      %s56 = sphi 0, %s53
      %s57 = sphi 0, %s56
      %s73 = sphi 0, %s57
      %s79 = sphi 0, %s81
      %s82 = sphi 0, %s79
      %s83 = sphi 0, %s82
      %s99 = sphi 0, %s83
      %s105 = sphi 0, %s107
      %s108 = sphi 0, %s105
      %s109 = sphi 0, %s108
      %s125 = sphi 0, %s109
      %s131 = sphi 0, %s133
      %s134 = sphi 0, %s131
      %s135 = sphi 0, %s134
      %s151 = sphi 0, %s135
      %s157 = sphi 0, %s159
      %s160 = sphi 0, %s157
      %s161 = sphi 0, %s160
      %s177 = sphi 0, %s161
      %s183 = sphi 0, %s185
      %s186 = sphi 0, %s183
      %s187 = sphi 0, %s186
      %s203 = sphi 0, %s187
      %s209 = sphi 0, %s211
      %s212 = sphi 0, %s209
      %s213 = sphi 0, %s212
      %s229 = sphi 0, %s213
      %s239 = sphi 0, %s241
      %s242 = sphi 0, %s239
      %s243 = sphi 0, %s242
      %s259 = sphi 0, %s243
      %s269 = sphi 0, %s271
      %s272 = sphi 0, %s269
      %s273 = sphi 0, %s272
      %s289 = sphi 0, %s273
      %s299 = sphi 0, %s301
      %s302 = sphi 0, %s299
      %s303 = sphi 0, %s302
      %s319 = sphi 0, %s303
    $region4: #{tpu_custom_call.1} parent=1 // loop_header_branch
      %25 = sbr.rel (%p23) target = $region8
    $region5: #{tpu_custom_call.1} parent=1 // loop_body
      %s27 = ssub.s32 %s22, 1
      %s28 = ssub.s32 %s22, 2
      %s38 = sadd.s32 1, %s31
      %p39 = scmp.ge.s32.totalorder %s38, 4
      %s40 = scalar_select %p39, 0, %s38
      %s41 = sadd.s32 1, %s30
      %s42 = scalar_select %p39, %s41, %s30
      %p43 = scmp.ge.s32.totalorder %s42, 1
      %s44 = scalar_select %p43, 0, %s42
      %s45 = sadd.s32 1, %s29
      %s46 = scalar_select %p43, %s45, %s29
      %p47 = scmp.ge.s32.totalorder %s46, 2
      %s48 = scalar_select %p47, 0, %s46
      %s49 = ssub.s32 %s29, %s48
      %s50 = ssub.s32 %s30, %s44
      %s51 = sor.u32 %s49, %s50
      %p52 = scmp.eq.s32.totalorder %s51, 0
      %s54 = sadd.s32 %s53, 1
      %s55 = scalar_select %p52, %s53, %s54
      %p58 = pneg %p52
      %p59 = scmp.eq.s32.totalorder %s22, 7
      %p60 = por %p58, %p59
      %p61 = scmp.ne.s32.totalorder %s53, %s56
      %p62 = scmp.eq.s32.totalorder %s22, 0
      %p63 = por %p61, %p62
      %p64 = scmp.ne.s32.totalorder %s53, %s56
      %p65 = scmp.eq.s32.totalorder %s27, 7
      %p66 = por %p64, %p65
      %p67 = scmp.ne.s32.totalorder %s56, %s57
      %p68 = scmp.eq.s32.totalorder %s27, 0
      %p69 = por %p67, %p68
      %p70 = scmp.ne.s32.totalorder %s56, %s57
      %p71 = scmp.eq.s32.totalorder %s28, 7
      %p72 = por %p70, %p71
      %p74 = scmp.ne.s32.totalorder %s57, %s73
      %p75 = scmp.eq.s32.totalorder %s28, 0
      %p76 = por %p74, %p75
      %s77 = ssub.s32 %s31, %s40
      %p78 = scmp.eq.s32.totalorder %s77, 0
      %s80 = sadd.s32 %s79, 1
      %s81 = scalar_select %p78, %s79, %s80
      %p84 = pneg %p78
      %p85 = scmp.eq.s32.totalorder %s22, 7
      %p86 = por %p84, %p85
      %p87 = scmp.ne.s32.totalorder %s79, %s82
      %p88 = scmp.eq.s32.totalorder %s22, 0
      %p89 = por %p87, %p88
      %p90 = scmp.ne.s32.totalorder %s79, %s82
      %p91 = scmp.eq.s32.totalorder %s27, 7
      %p92 = por %p90, %p91
      %p93 = scmp.ne.s32.totalorder %s82, %s83
      %p94 = scmp.eq.s32.totalorder %s27, 0
      %p95 = por %p93, %p94
      %p96 = scmp.ne.s32.totalorder %s82, %s83
      %p97 = scmp.eq.s32.totalorder %s28, 7
      %p98 = por %p96, %p97
      %p100 = scmp.ne.s32.totalorder %s83, %s99
      %p101 = scmp.eq.s32.totalorder %s28, 0
      %p102 = por %p100, %p101
      %s103 = ssub.s32 %s31, %s40
      %p104 = scmp.eq.s32.totalorder %s103, 0
      %s106 = sadd.s32 %s105, 1
      %s107 = scalar_select %p104, %s105, %s106
      %p110 = pneg %p104
      %p111 = scmp.eq.s32.totalorder %s22, 7
      %p112 = por %p110, %p111
      %p113 = scmp.ne.s32.totalorder %s105, %s108
      %p114 = scmp.eq.s32.totalorder %s22, 0
      %p115 = por %p113, %p114
      %p116 = scmp.ne.s32.totalorder %s105, %s108
      %p117 = scmp.eq.s32.totalorder %s27, 7
      %p118 = por %p116, %p117
      %p119 = scmp.ne.s32.totalorder %s108, %s109
      %p120 = scmp.eq.s32.totalorder %s27, 0
      %p121 = por %p119, %p120
      %p122 = scmp.ne.s32.totalorder %s108, %s109
      %p123 = scmp.eq.s32.totalorder %s28, 7
      %p124 = por %p122, %p123
      %p126 = scmp.ne.s32.totalorder %s109, %s125
      %p127 = scmp.eq.s32.totalorder %s28, 0
      %p128 = por %p126, %p127
      %s129 = ssub.s32 %s31, %s40
      %p130 = scmp.eq.s32.totalorder %s129, 0
      %s132 = sadd.s32 %s131, 1
      %s133 = scalar_select %p130, %s131, %s132
      %p136 = pneg %p130
      %p137 = scmp.eq.s32.totalorder %s22, 7
      %p138 = por %p136, %p137
      %p139 = scmp.ne.s32.totalorder %s131, %s134
      %p140 = scmp.eq.s32.totalorder %s22, 0
      %p141 = por %p139, %p140
      %p142 = scmp.ne.s32.totalorder %s131, %s134
      %p143 = scmp.eq.s32.totalorder %s27, 7
      %p144 = por %p142, %p143
      %p145 = scmp.ne.s32.totalorder %s134, %s135
      %p146 = scmp.eq.s32.totalorder %s27, 0
      %p147 = por %p145, %p146
      %p148 = scmp.ne.s32.totalorder %s134, %s135
      %p149 = scmp.eq.s32.totalorder %s28, 7
      %p150 = por %p148, %p149
      %p152 = scmp.ne.s32.totalorder %s135, %s151
      %p153 = scmp.eq.s32.totalorder %s28, 0
      %p154 = por %p152, %p153
      %s155 = ssub.s32 %s31, %s40
      %p156 = scmp.eq.s32.totalorder %s155, 0
      %s158 = sadd.s32 %s157, 1
      %s159 = scalar_select %p156, %s157, %s158
      %p162 = pneg %p156
      %p163 = scmp.eq.s32.totalorder %s22, 7
      %p164 = por %p162, %p163
      %p165 = scmp.ne.s32.totalorder %s157, %s160
      %p166 = scmp.eq.s32.totalorder %s22, 0
      %p167 = por %p165, %p166
      %p168 = scmp.ne.s32.totalorder %s157, %s160
      %p169 = scmp.eq.s32.totalorder %s27, 7
      %p170 = por %p168, %p169
      %p171 = scmp.ne.s32.totalorder %s160, %s161
      %p172 = scmp.eq.s32.totalorder %s27, 0
      %p173 = por %p171, %p172
      %p174 = scmp.ne.s32.totalorder %s160, %s161
      %p175 = scmp.eq.s32.totalorder %s28, 7
      %p176 = por %p174, %p175
      %p178 = scmp.ne.s32.totalorder %s161, %s177
      %p179 = scmp.eq.s32.totalorder %s28, 0
      %p180 = por %p178, %p179
      %s181 = ssub.s32 %s31, %s40
      %p182 = scmp.eq.s32.totalorder %s181, 0
      %s184 = sadd.s32 %s183, 1
      %s185 = scalar_select %p182, %s183, %s184
      %p188 = pneg %p182
      %p189 = scmp.eq.s32.totalorder %s22, 7
      %p190 = por %p188, %p189
      %p191 = scmp.ne.s32.totalorder %s183, %s186
      %p192 = scmp.eq.s32.totalorder %s22, 0
      %p193 = por %p191, %p192
      %p194 = scmp.ne.s32.totalorder %s183, %s186
      %p195 = scmp.eq.s32.totalorder %s27, 7
      %p196 = por %p194, %p195
      %p197 = scmp.ne.s32.totalorder %s186, %s187
      %p198 = scmp.eq.s32.totalorder %s27, 0
      %p199 = por %p197, %p198
      %p200 = scmp.ne.s32.totalorder %s186, %s187
      %p201 = scmp.eq.s32.totalorder %s28, 7
      %p202 = por %p200, %p201
      %p204 = scmp.ne.s32.totalorder %s187, %s203
      %p205 = scmp.eq.s32.totalorder %s28, 0
      %p206 = por %p204, %p205
      %s207 = ssub.s32 %s31, %s40
      %p208 = scmp.eq.s32.totalorder %s207, 0
      %s210 = sadd.s32 %s209, 1
      %s211 = scalar_select %p208, %s209, %s210
      %p214 = pneg %p208
      %p215 = scmp.eq.s32.totalorder %s22, 7
      %p216 = por %p214, %p215
      %p217 = scmp.ne.s32.totalorder %s209, %s212
      %p218 = scmp.eq.s32.totalorder %s22, 0
      %p219 = por %p217, %p218
      %p220 = scmp.ne.s32.totalorder %s209, %s212
      %p221 = scmp.eq.s32.totalorder %s27, 7
      %p222 = por %p220, %p221
      %p223 = scmp.ne.s32.totalorder %s212, %s213
      %p224 = scmp.eq.s32.totalorder %s27, 0
      %p225 = por %p223, %p224
      %p226 = scmp.ne.s32.totalorder %s212, %s213
      %p227 = scmp.eq.s32.totalorder %s28, 7
      %p228 = por %p226, %p227
      %p230 = scmp.ne.s32.totalorder %s213, %s229
      %p231 = scmp.eq.s32.totalorder %s28, 0
      %p232 = por %p230, %p231
      %s233 = ssub.s32 %s29, %s48
      %s234 = ssub.s32 %s31, %s40
      %s235 = sor.u32 %s233, %s234
      %s236 = ssub.s32 %s30, %s44
      %s237 = sor.u32 %s235, %s236
      %p238 = scmp.eq.s32.totalorder %s237, 0
      %s240 = sadd.s32 %s239, 1
      %s241 = scalar_select %p238, %s239, %s240
      %p244 = pneg %p238
      %p245 = scmp.eq.s32.totalorder %s22, 7
      %p246 = por %p244, %p245
      %p247 = scmp.ne.s32.totalorder %s239, %s242
      %p248 = scmp.eq.s32.totalorder %s22, 0
      %p249 = por %p247, %p248
      %p250 = scmp.ne.s32.totalorder %s239, %s242
      %p251 = scmp.eq.s32.totalorder %s27, 7
      %p252 = por %p250, %p251
      %p253 = scmp.ne.s32.totalorder %s242, %s243
      %p254 = scmp.eq.s32.totalorder %s27, 0
      %p255 = por %p253, %p254
      %p256 = scmp.ne.s32.totalorder %s242, %s243
      %p257 = scmp.eq.s32.totalorder %s28, 7
      %p258 = por %p256, %p257
      %p260 = scmp.ne.s32.totalorder %s243, %s259
      %p261 = scmp.eq.s32.totalorder %s28, 0
      %p262 = por %p260, %p261
      %s263 = ssub.s32 %s29, %s48
      %s264 = ssub.s32 %s31, %s40
      %s265 = sor.u32 %s263, %s264
      %s266 = ssub.s32 %s30, %s44
      %s267 = sor.u32 %s265, %s266
      %p268 = scmp.eq.s32.totalorder %s267, 0
      %s270 = sadd.s32 %s269, 1
      %s271 = scalar_select %p268, %s269, %s270
      %p274 = pneg %p268
      %p275 = scmp.eq.s32.totalorder %s22, 7
      %p276 = por %p274, %p275
      %p277 = scmp.ne.s32.totalorder %s269, %s272
      %p278 = scmp.eq.s32.totalorder %s22, 0
      %p279 = por %p277, %p278
      %p280 = scmp.ne.s32.totalorder %s269, %s272
      %p281 = scmp.eq.s32.totalorder %s27, 7
      %p282 = por %p280, %p281
      %p283 = scmp.ne.s32.totalorder %s272, %s273
      %p284 = scmp.eq.s32.totalorder %s27, 0
      %p285 = por %p283, %p284
      %p286 = scmp.ne.s32.totalorder %s272, %s273
      %p287 = scmp.eq.s32.totalorder %s28, 7
      %p288 = por %p286, %p287
      %p290 = scmp.ne.s32.totalorder %s273, %s289
      %p291 = scmp.eq.s32.totalorder %s28, 0
      %p292 = por %p290, %p291
      %s293 = ssub.s32 %s29, %s48
      %s294 = ssub.s32 %s31, %s40
      %s295 = sor.u32 %s293, %s294
      %s296 = ssub.s32 %s30, %s44
      %s297 = sor.u32 %s295, %s296
      %p298 = scmp.eq.s32.totalorder %s297, 0
      %s300 = sadd.s32 %s299, 1
      %s301 = scalar_select %p298, %s299, %s300
      %p304 = pneg %p298
      %p305 = scmp.eq.s32.totalorder %s22, 7
      %p306 = por %p304, %p305
      %p307 = scmp.ne.s32.totalorder %s299, %s302
      %p308 = scmp.eq.s32.totalorder %s22, 0
      %p309 = por %p307, %p308
      %p310 = scmp.ne.s32.totalorder %s299, %s302
      %p311 = scmp.eq.s32.totalorder %s27, 7
      %p312 = por %p310, %p311
      %p313 = scmp.ne.s32.totalorder %s302, %s303
      %p314 = scmp.eq.s32.totalorder %s27, 0
      %p315 = por %p313, %p314
      %p316 = scmp.ne.s32.totalorder %s302, %s303
      %p317 = scmp.eq.s32.totalorder %s28, 7
      %p318 = por %p316, %p317
      %p320 = scmp.ne.s32.totalorder %s303, %s319
      %p321 = scmp.eq.s32.totalorder %s28, 0
      %p322 = por %p320, %p321
      %p323 = scmp.le.s32.totalorder 1, %s22
      %p324 = scmp.lt.s32.totalorder %s22, 9
      %p325 = pnand %p323, %p324
      %p326 = pneg %p325
      // Predicated region
      $region9: #{tpu_custom_call.1} parent=5 // pred_check
        _
      $region10: #{tpu_custom_call.1} parent=5 // pred_check_branch
        %328 = sbr.rel (%p325) target = $region12
      $region11: #{tpu_custom_call.1} parent=5 // pred_region
        %s329 = ssub.s32 %s22, 1
      $region12: #{tpu_custom_call.1} parent=5 // pred_fallthru
        _
      %p330 = scmp.lt.s32.totalorder %s22, 8
      // Predicated region
      $region13: #{tpu_custom_call.1} parent=5 // pred_check
        %p331 = pneg %p330
      $region14: #{tpu_custom_call.1} parent=5 // pred_check_branch
        %333 = sbr.rel (%p331) target = $region16
      $region15: #{tpu_custom_call.1} parent=5 // pred_region
        // Predicated region
        $region17: #{tpu_custom_call.1} parent=15 // pred_check
          %p334 = pneg %p63
        $region18: #{tpu_custom_call.1} parent=15 // pred_check_branch
          %336 = sbr.rel (%p334) target = $region20
        $region19: #{tpu_custom_call.1} parent=15 // pred_region
          %p337 = scmp.lt.s32.totalorder %s29, 1
          %s338 = scalar_select %p337, %s29, 1
          %p339 = scmp.lt.s32.totalorder %s30, 0
          %s340 = scalar_select %p339, %s30, 0
          %s341 = sadd.s32 %s340, %s338
          %s342 = smul.addr %s341, 8
          %s343 = scalar_lea.vmem %s0, %s342
        $region20: #{tpu_custom_call.1} parent=15 // pred_fallthru
          _
        // Predicated region
        $region21: #{tpu_custom_call.1} parent=15 // pred_check
          %p344 = pneg %p89
        $region22: #{tpu_custom_call.1} parent=15 // pred_check_branch
          %346 = sbr.rel (%p344) target = $region24
        $region23: #{tpu_custom_call.1} parent=15 // pred_region
          %p347 = scmp.lt.s32.totalorder %s31, 3
          %s348 = scalar_select %p347, %s31, 3
          %s349 = smul.addr %s348, 4
          %s350 = smul.addr %s349, 4
          %s351 = scalar_lea.vmem %s1, %s350
        $region24: #{tpu_custom_call.1} parent=15 // pred_fallthru
          _
        // Predicated region
        $region25: #{tpu_custom_call.1} parent=15 // pred_check
          %p352 = pneg %p115
        $region26: #{tpu_custom_call.1} parent=15 // pred_check_branch
          %354 = sbr.rel (%p352) target = $region28
        $region27: #{tpu_custom_call.1} parent=15 // pred_region
          %p355 = scmp.lt.s32.totalorder %s31, 3
          %s356 = scalar_select %p355, %s31, 3
          %s357 = smul.addr %s356, 4
          %s358 = smul.addr %s357, 4
          %s359 = scalar_lea.vmem %s2, %s358
        $region28: #{tpu_custom_call.1} parent=15 // pred_fallthru
          _
        // Predicated region
        $region29: #{tpu_custom_call.1} parent=15 // pred_check
          %p360 = pneg %p141
        $region30: #{tpu_custom_call.1} parent=15 // pred_check_branch
          %362 = sbr.rel (%p360) target = $region32
        $region31: #{tpu_custom_call.1} parent=15 // pred_region
          %p363 = scmp.lt.s32.totalorder %s31, 3
          %s364 = scalar_select %p363, %s31, 3
          %s365 = smul.addr %s364, 4
          %s366 = smul.addr %s365, 4
          %s367 = scalar_lea.vmem %s3, %s366
        $region32: #{tpu_custom_call.1} parent=15 // pred_fallthru
          _
        // Predicated region
        $region33: #{tpu_custom_call.1} parent=15 // pred_check
          %p368 = pneg %p167
        $region34: #{tpu_custom_call.1} parent=15 // pred_check_branch
          %370 = sbr.rel (%p368) target = $region36
        $region35: #{tpu_custom_call.1} parent=15 // pred_region
          %p371 = scmp.lt.s32.totalorder %s31, 3
          %s372 = scalar_select %p371, %s31, 3
          %s373 = scalar_lea.vmem %s4, %s372
        $region36: #{tpu_custom_call.1} parent=15 // pred_fallthru
          _
        // Predicated region
        $region37: #{tpu_custom_call.1} parent=15 // pred_check
          %p374 = pneg %p193
        $region38: #{tpu_custom_call.1} parent=15 // pred_check_branch
          %376 = sbr.rel (%p374) target = $region40
        $region39: #{tpu_custom_call.1} parent=15 // pred_region
          %p377 = scmp.lt.s32.totalorder %s31, 3
          %s378 = scalar_select %p377, %s31, 3
          %s379 = scalar_lea.vmem %s5, %s378
        $region40: #{tpu_custom_call.1} parent=15 // pred_fallthru
          _
        // Predicated region
        $region41: #{tpu_custom_call.1} parent=15 // pred_check
          %p380 = pneg %p219
        $region42: #{tpu_custom_call.1} parent=15 // pred_check_branch
          %382 = sbr.rel (%p380) target = $region44
        $region43: #{tpu_custom_call.1} parent=15 // pred_region
          %p383 = scmp.lt.s32.totalorder %s31, 3
          %s384 = scalar_select %p383, %s31, 3
          %s385 = scalar_lea.vmem %s6, %s384
        $region44: #{tpu_custom_call.1} parent=15 // pred_fallthru
          _
      $region16: #{tpu_custom_call.1} parent=5 // pred_fallthru
        _
      %p386 = scmp.le.s32.totalorder 1, %s22
      %p387 = scmp.lt.s32.totalorder %s22, 9
      %p388 = pnand %p386, %p387
      %p389 = pneg %p388
      // Predicated region
      $region45: #{tpu_custom_call.1} parent=5 // pred_check
        _
      $region46: #{tpu_custom_call.1} parent=5 // pred_check_branch
        %391 = sbr.rel (%p388) target = $region48
      $region47: #{tpu_custom_call.1} parent=5 // pred_region
        %s392 = ssub.s32 %s22, 1
        %p393 = scmp.lt.s32.totalorder %s32, 1
        %s394 = scalar_select %p393, %s32, 1
        %p395 = scmp.lt.s32.totalorder %s33, 0
        %s396 = scalar_select %p395, %s33, 0
        %s397 = sadd.s32 %s396, %s394
        %s398 = smul.addr %s397, 8
        %s399 = scalar_lea.vmem %s0, %s398
        %p400 = pneg %p69
        %p401 = pneg %p66
        %p402 = scmp.lt.s32.totalorder %s34, 3
        %s403 = scalar_select %p402, %s34, 3
        %s404 = smul.addr %s403, 4
        %s405 = smul.addr %s404, 4
        %s406 = scalar_lea.vmem %s1, %s405
        %p407 = pneg %p95
        %p408 = pneg %p92
        %p409 = scmp.lt.s32.totalorder %s34, 3
        %s410 = scalar_select %p409, %s34, 3
        %s411 = smul.addr %s410, 4
        %s412 = smul.addr %s411, 4
        %s413 = scalar_lea.vmem %s2, %s412
        %p414 = pneg %p121
        %p415 = pneg %p118
        %p416 = scmp.lt.s32.totalorder %s34, 3
        %s417 = scalar_select %p416, %s34, 3
        %s418 = smul.addr %s417, 4
        %s419 = smul.addr %s418, 4
        %s420 = scalar_lea.vmem %s3, %s419
        %p421 = pneg %p147
        %p422 = pneg %p144
        %p423 = scmp.lt.s32.totalorder %s34, 3
        %s424 = scalar_select %p423, %s34, 3
        %s425 = scalar_lea.vmem %s4, %s424
        %p426 = pneg %p173
        %p427 = pneg %p170
        %p428 = scmp.lt.s32.totalorder %s34, 3
        %s429 = scalar_select %p428, %s34, 3
        %s430 = scalar_lea.vmem %s5, %s429
        %p431 = pneg %p199
        %p432 = pneg %p196
        %p433 = scmp.lt.s32.totalorder %s34, 3
        %s434 = scalar_select %p433, %s34, 3
        %s435 = scalar_lea.vmem %s6, %s434
        %p436 = pneg %p225
        %p437 = pneg %p222
        %p438 = pneg %p255
        %p439 = pneg %p252
        %s440 = sand.u32 %s242, 1
        %s441 = scalar_lea.sflag [#allocation3], %s440
        %s442 = sand.u32 %s242, 1
        %s443 = smul.addr %s442, 4
        %s444 = scalar_lea.vmem [#allocation2], %s443
        %p445 = pneg %p285
        %p446 = pneg %p282
        %s447 = sand.u32 %s27, 1
        %s448 = scalar_lea.sflag [#allocation5], %s447
        %s449 = sand.u32 %s272, 1
        %s450 = smul.addr %s449, 4
        %s451 = scalar_lea.vmem [#allocation4], %s450
        %p452 = pneg %p315
        %p453 = pneg %p312
        %s454 = sand.u32 %s27, 1
        %s455 = scalar_lea.sflag [#allocation5], %s454
        %s456 = sand.u32 %s302, 1
        %s457 = smul.addr %s456, 4
        %s458 = scalar_lea.vmem [#allocation6], %s457
        %p459 = scmp.lt.s32.totalorder %s32, 1
        %s460 = scalar_select %p459, %s32, 1
        %p461 = scmp.lt.s32.totalorder %s33, 0
        %s462 = scalar_select %p461, %s33, 0
        %s463 = sadd.s32 %s462, %s460
        %s464 = smul.addr %s463, 8
        %s465 = scalar_lea.vmem %s0, %s464
        %p466 = scmp.lt.s32.totalorder %s34, 3
        %s467 = scalar_select %p466, %s34, 3
        %s468 = smul.addr %s467, 4
        %s469 = smul.addr %s468, 4
        %s470 = scalar_lea.vmem %s1, %s469
        %p471 = scmp.lt.s32.totalorder %s34, 3
        %s472 = scalar_select %p471, %s34, 3
        %s473 = smul.addr %s472, 4
        %s474 = smul.addr %s473, 4
        %s475 = scalar_lea.vmem %s2, %s474
        %p476 = scmp.lt.s32.totalorder %s34, 3
        %s477 = scalar_select %p476, %s34, 3
        %s478 = smul.addr %s477, 4
        %s479 = smul.addr %s478, 4
        %s480 = scalar_lea.vmem %s3, %s479
        %p481 = scmp.lt.s32.totalorder %s34, 3
        %s482 = scalar_select %p481, %s34, 3
        %s483 = scalar_lea.vmem %s4, %s482
        %p484 = scmp.lt.s32.totalorder %s34, 3
        %s485 = scalar_select %p484, %s34, 3
        %s486 = scalar_lea.vmem %s5, %s485
        %p487 = scmp.lt.s32.totalorder %s34, 3
        %s488 = scalar_select %p487, %s34, 3
        %s489 = scalar_lea.vmem %s6, %s488
        %v491 = vld [vmem:[%s465] sm:$0xff]
        %v492 = vpack.c.bf16 %v491, %v491
        %v493 = vld [vmem:[%s470] sm:$0xf]
        %v494 = vld [vmem:[%s470 + $0x4] sm:$0xf]
        %v495 = vld [vmem:[%s470 + $0x8] sm:$0xf]
        %v496 = vld [vmem:[%s470 + $0xc] sm:$0xf]
        %v497 = vld [vmem:[%s483] sm:$0x1]
        %v499 = vlaneseq
        %v500 = vshrl.u32 %v499, 7
        %v501 = vsub.s32 0, %v500
        %v502 = vrot.slane %v497, %v501
        %v508 = vunpack.c.l.b16 %v493
        %v509 = vunpack.c.l.b16 %v494
        %v510 = vunpack.c.l.b16 %v495
        %v511 = vunpack.c.l.b16 %v496
        %v512 = vpack.c.b16 %v509, %v508
        %v513 = vpack.c.b16 %v511, %v510
        %vm516 = vcmask 261120
        %v518 = vsel %vm516, %v492, 0
        %520 = vmatprep.subr.bf16.mxu0 0
        %521 = vmatpush1.bf16.msra.mxu0 %v512
        %522 = vmatprep.subr.bf16.mxu0 0
        %523 = vmatpush1.bf16.msra.mxu0 %v513
        %524 = vmatprep.subr.bf16.mxu0 0
        %525 = vmatpush1.bf16.msra.mxu0 0
        %526 = vmatprep.subr.bf16.mxu0 0
        %527 = vmatpush1.bf16.msra.mxu0 0
        %528 = vmatprep.subr.bf16.mxu0 0
        %529 = vmatpush1.bf16.msra.mxu0 0
        %530 = vmatprep.subr.bf16.mxu0 0
        %531 = vmatpush1.bf16.msra.mxu0 0
        %532 = vmatprep.subr.bf16.mxu0 0
        %533 = vmatpush1.bf16.msra.mxu0 0
        %534 = vmatprep.subr.bf16.mxu0 0
        %535 = vmatpush1.bf16.msra.mxu0 0
        %536 = vmatprep.subr.bf16.mxu0 0
        %537 = vmatpush1.bf16.msra.mxu0 0
        %538 = vmatprep.subr.bf16.mxu0 0
        %539 = vmatpush1.bf16.msra.mxu0 0
        %540 = vmatprep.subr.bf16.mxu0 0
        %541 = vmatpush1.bf16.msra.mxu0 0
        %542 = vmatprep.subr.bf16.mxu0 0
        %543 = vmatpush1.bf16.msra.mxu0 0
        %544 = vmatprep.subr.bf16.mxu0 0
        %545 = vmatpush1.bf16.msra.mxu0 0
        %546 = vmatprep.subr.bf16.mxu0 0
        %547 = vmatpush1.bf16.msra.mxu0 0
        %548 = vmatprep.subr.bf16.mxu0 0
        %549 = vmatpush1.bf16.msra.mxu0 0
        %550 = vmatprep.subr.bf16.mxu0 0
        %551 = vmatpush1.bf16.msra.mxu0 0
        %552 = vmatprep.mubr.bf16.mxu0 0
        %553 = vmatmul.mubr.bf16.gmra.mrb[0].mxu0 %v518
        %v554 = vpop.f32.mrb[0].mxu0
        %v555 = vadd.f32 %v502, %v554
        %v556 = vpop.f32.mrb[0].mxu0
        %v557 = vpop.f32.mrb[0].mxu0
        %v558 = vpop.f32.mrb[0].mxu0
        %559 = vdwg.mxu0
        %v560 = vld [vmem:[%s475] sm:$0xf]
        %v561 = vld [vmem:[%s475 + $0x4] sm:$0xf]
        %v562 = vld [vmem:[%s475 + $0x8] sm:$0xf]
        %v563 = vld [vmem:[%s475 + $0xc] sm:$0xf]
        %v564 = vld [vmem:[%s486] sm:$0x1]
        %v566 = vlaneseq
        %v567 = vshrl.u32 %v566, 7
        %v568 = vsub.s32 0, %v567
        %v569 = vrot.slane %v564, %v568
        %v575 = vunpack.c.l.b16 %v560
        %v576 = vunpack.c.l.b16 %v561
        %v577 = vunpack.c.l.b16 %v562
        %v578 = vunpack.c.l.b16 %v563
        %v579 = vpack.c.b16 %v576, %v575
        %v580 = vpack.c.b16 %v578, %v577
        %583 = vmatprep.subr.bf16.mxu0 0
        %584 = vmatpush1.bf16.msra.mxu0 %v579
        %585 = vmatprep.subr.bf16.mxu0 0
        %586 = vmatpush1.bf16.msra.mxu0 %v580
        %587 = vmatprep.subr.bf16.mxu0 0
        %588 = vmatpush1.bf16.msra.mxu0 0
        %589 = vmatprep.subr.bf16.mxu0 0
        %590 = vmatpush1.bf16.msra.mxu0 0
        %591 = vmatprep.subr.bf16.mxu0 0
        %592 = vmatpush1.bf16.msra.mxu0 0
        %593 = vmatprep.subr.bf16.mxu0 0
        %594 = vmatpush1.bf16.msra.mxu0 0
        %595 = vmatprep.subr.bf16.mxu0 0
        %596 = vmatpush1.bf16.msra.mxu0 0
        %597 = vmatprep.subr.bf16.mxu0 0
        %598 = vmatpush1.bf16.msra.mxu0 0
        %599 = vmatprep.subr.bf16.mxu0 0
        %600 = vmatpush1.bf16.msra.mxu0 0
        %601 = vmatprep.subr.bf16.mxu0 0
        %602 = vmatpush1.bf16.msra.mxu0 0
        %603 = vmatprep.subr.bf16.mxu0 0
        %604 = vmatpush1.bf16.msra.mxu0 0
        %605 = vmatprep.subr.bf16.mxu0 0
        %606 = vmatpush1.bf16.msra.mxu0 0
        %607 = vmatprep.subr.bf16.mxu0 0
        %608 = vmatpush1.bf16.msra.mxu0 0
        %609 = vmatprep.subr.bf16.mxu0 0
        %610 = vmatpush1.bf16.msra.mxu0 0
        %611 = vmatprep.subr.bf16.mxu0 0
        %612 = vmatpush1.bf16.msra.mxu0 0
        %613 = vmatprep.subr.bf16.mxu0 0
        %614 = vmatpush1.bf16.msra.mxu0 0
        %615 = vmatprep.mubr.bf16.mxu0 0
        %616 = vmatmul.mubr.bf16.gmra.mrb[0].mxu0 %v518
        %v617 = vpop.f32.mrb[0].mxu0
        %v618 = vadd.f32 %v569, %v617
        %v619 = vpop.f32.mrb[0].mxu0
        %v620 = vpop.f32.mrb[0].mxu0
        %v621 = vpop.f32.mrb[0].mxu0
        %622 = vdwg.mxu0
        %v623 = vld [vmem:[%s480] sm:$0xf]
        %v624 = vld [vmem:[%s480 + $0x4] sm:$0xf]
        %v625 = vld [vmem:[%s480 + $0x8] sm:$0xf]
        %v626 = vld [vmem:[%s480 + $0xc] sm:$0xf]
        %v627 = vld [vmem:[%s489] sm:$0x1]
        %v629 = vlaneseq
        %v630 = vshrl.u32 %v629, 7
        %v631 = vsub.s32 0, %v630
        %v632 = vrot.slane %v627, %v631
        %v638 = vunpack.c.l.b16 %v623
        %v639 = vunpack.c.l.b16 %v624
        %v640 = vunpack.c.l.b16 %v625
        %v641 = vunpack.c.l.b16 %v626
        %v642 = vpack.c.b16 %v639, %v638
        %v643 = vpack.c.b16 %v641, %v640
        %646 = vmatprep.subr.bf16.mxu0 0
        %647 = vmatpush1.bf16.msra.mxu0 %v642
        %648 = vmatprep.subr.bf16.mxu0 0
        %649 = vmatpush1.bf16.msra.mxu0 %v643
        %650 = vmatprep.subr.bf16.mxu0 0
        %651 = vmatpush1.bf16.msra.mxu0 0
        %652 = vmatprep.subr.bf16.mxu0 0
        %653 = vmatpush1.bf16.msra.mxu0 0
        %654 = vmatprep.subr.bf16.mxu0 0
        %655 = vmatpush1.bf16.msra.mxu0 0
        %656 = vmatprep.subr.bf16.mxu0 0
        %657 = vmatpush1.bf16.msra.mxu0 0
        %658 = vmatprep.subr.bf16.mxu0 0
        %659 = vmatpush1.bf16.msra.mxu0 0
        %660 = vmatprep.subr.bf16.mxu0 0
        %661 = vmatpush1.bf16.msra.mxu0 0
        %662 = vmatprep.subr.bf16.mxu0 0
        %663 = vmatpush1.bf16.msra.mxu0 0
        %664 = vmatprep.subr.bf16.mxu0 0
        %665 = vmatpush1.bf16.msra.mxu0 0
        %666 = vmatprep.subr.bf16.mxu0 0
        %667 = vmatpush1.bf16.msra.mxu0 0
        %668 = vmatprep.subr.bf16.mxu0 0
        %669 = vmatpush1.bf16.msra.mxu0 0
        %670 = vmatprep.subr.bf16.mxu0 0
        %671 = vmatpush1.bf16.msra.mxu0 0
        %672 = vmatprep.subr.bf16.mxu0 0
        %673 = vmatpush1.bf16.msra.mxu0 0
        %674 = vmatprep.subr.bf16.mxu0 0
        %675 = vmatpush1.bf16.msra.mxu0 0
        %676 = vmatprep.subr.bf16.mxu0 0
        %677 = vmatpush1.bf16.msra.mxu0 0
        %678 = vmatprep.mubr.bf16.mxu0 0
        %679 = vmatmul.mubr.bf16.gmra.mrb[0].mxu0 %v518
        %v680 = vpop.f32.mrb[0].mxu0
        %v681 = vadd.f32 %v632, %v680
        %v682 = vpop.f32.mrb[0].mxu0
        %v683 = vpop.f32.mrb[0].mxu0
        %v684 = vpop.f32.mrb[0].mxu0
        %685 = vdwg.mxu0
        %v686 = vmul.f32 %v555, 0.35355338
        %v687 = vpack.c.bf16 %v686, %v686
        %vm688 = vcmask 60416
        %689 = vst.msk [vmem:[%s444] sm:$0xf] %vm688, %v687
        %v690 = vpack.c.bf16 %v618, %v618
        %691 = vst.msk [vmem:[%s451] sm:$0xf] %vm688, %v690
        %v692 = vpack.c.bf16 %v681, %v681
        %693 = vst.msk [vmem:[%s458] sm:$0xf] %vm688, %v692
        %s694 = sand.u32 %s242, 1
        %s695 = scalar_lea.sflag [#allocation3], %s694
        %s696 = sand.u32 %s242, 1
        %s697 = smul.addr %s696, 4
        %s698 = scalar_lea.vmem [#allocation2], %s697
        %s699 = sand.u32 %s27, 1
        %s700 = scalar_lea.sflag [#allocation5], %s699
        %s701 = sand.u32 %s272, 1
        %s702 = smul.addr %s701, 4
        %s703 = scalar_lea.vmem [#allocation4], %s702
        %s704 = sand.u32 %s27, 1
        %s705 = scalar_lea.sflag [#allocation5], %s704
        %s706 = sand.u32 %s302, 1
        %s707 = smul.addr %s706, 4
        %s708 = scalar_lea.vmem [#allocation6], %s707
        // Predicated region
        $region49: #{tpu_custom_call.1} parent=47 // pred_check
          %p709 = pneg %p252
        $region50: #{tpu_custom_call.1} parent=47 // pred_check_branch
          %711 = sbr.rel (%p709) target = $region52
        $region51: #{tpu_custom_call.1} parent=47 // pred_region
          %s713 = ssub.s32 64, 64
          %714 = vsyncadd %s695, %s713
          %s715 = sadd.s32 %s33, %s34
          %s716 = smul.addr %s32, 4
          %s717 = sadd.s32 %s715, %s716
          %s718 = smul.addr %s717, 64
          %s719 = scalar_lea.hbm %s7, %s718
          %s721 = sshll.u32 %s698, 4
          %s722 = int_to_ptr.vmem [resolvable:$true] %s721
          %724 = dma.vmem_to_hbm [thread:$0]  %s722, 64, %s719, %s695
        $region52: #{tpu_custom_call.1} parent=47 // pred_fallthru
          _
        // Predicated region
        $region53: #{tpu_custom_call.1} parent=47 // pred_check
          %p725 = pneg %p282
        $region54: #{tpu_custom_call.1} parent=47 // pred_check_branch
          %727 = sbr.rel (%p725) target = $region56
        $region55: #{tpu_custom_call.1} parent=47 // pred_region
          %s729 = ssub.s32 64, 64
          %730 = vsyncadd %s700, %s729
          %s731 = sadd.s32 %s33, %s34
          %s732 = smul.addr %s32, 4
          %s733 = sadd.s32 %s731, %s732
          %s734 = smul.addr %s733, 64
          %s735 = scalar_lea.hbm %s8, %s734
          %s737 = sshll.u32 %s703, 4
          %s738 = int_to_ptr.vmem [resolvable:$true] %s737
          %740 = dma.vmem_to_hbm [thread:$0]  %s738, 64, %s735, %s700
        $region56: #{tpu_custom_call.1} parent=47 // pred_fallthru
          _
        // Predicated region
        $region57: #{tpu_custom_call.1} parent=47 // pred_check
          %p741 = pneg %p312
        $region58: #{tpu_custom_call.1} parent=47 // pred_check_branch
          %743 = sbr.rel (%p741) target = $region60
        $region59: #{tpu_custom_call.1} parent=47 // pred_region
          %s745 = ssub.s32 64, 64
          %746 = vsyncadd %s705, %s745
          %s747 = sadd.s32 %s33, %s34
          %s748 = smul.addr %s32, 4
          %s749 = sadd.s32 %s747, %s748
          %s750 = smul.addr %s749, 64
          %s751 = scalar_lea.hbm %s9, %s750
          %s753 = sshll.u32 %s708, 4
          %s754 = int_to_ptr.vmem [resolvable:$true] %s753
          %756 = dma.vmem_to_hbm [thread:$0]  %s754, 64, %s751, %s705
        $region60: #{tpu_custom_call.1} parent=47 // pred_fallthru
          _
      $region48: #{tpu_custom_call.1} parent=5 // pred_fallthru
        _
      %p757 = scmp.le.s32.totalorder 2, %s22
      // Predicated region
      $region61: #{tpu_custom_call.1} parent=5 // pred_check
        %p758 = pneg %p757
      $region62: #{tpu_custom_call.1} parent=5 // pred_check_branch
        %760 = sbr.rel (%p758) target = $region64
      $region63: #{tpu_custom_call.1} parent=5 // pred_region
        %s761 = ssub.s32 %s22, 2
        // Predicated region
        $region65: #{tpu_custom_call.1} parent=63 // pred_check
          %p762 = pneg %p258
        $region66: #{tpu_custom_call.1} parent=63 // pred_check_branch
          %764 = sbr.rel (%p762) target = $region68
        $region67: #{tpu_custom_call.1} parent=63 // pred_region
          %s765 = sand.u32 %s243, 1
          %s766 = scalar_lea.sflag [#allocation3], %s765
          %s767 = sand.u32 %s243, 1
          %s768 = smul.addr %s767, 4
          %s769 = scalar_lea.vmem [#allocation2], %s768
          %770 = dma.done %s766, 64
        $region68: #{tpu_custom_call.1} parent=63 // pred_fallthru
          _
        // Predicated region
        $region69: #{tpu_custom_call.1} parent=63 // pred_check
          %p771 = pneg %p288
        $region70: #{tpu_custom_call.1} parent=63 // pred_check_branch
          %773 = sbr.rel (%p771) target = $region72
        $region71: #{tpu_custom_call.1} parent=63 // pred_region
          %s774 = sand.u32 %s28, 1
          %s775 = scalar_lea.sflag [#allocation5], %s774
          %s776 = sand.u32 %s273, 1
          %s777 = smul.addr %s776, 4
          %s778 = scalar_lea.vmem [#allocation4], %s777
          %779 = dma.done %s775, 64
        $region72: #{tpu_custom_call.1} parent=63 // pred_fallthru
          _
        // Predicated region
        $region73: #{tpu_custom_call.1} parent=63 // pred_check
          %p780 = pneg %p318
        $region74: #{tpu_custom_call.1} parent=63 // pred_check_branch
          %782 = sbr.rel (%p780) target = $region76
        $region75: #{tpu_custom_call.1} parent=63 // pred_region
          %s783 = sand.u32 %s28, 1
          %s784 = scalar_lea.sflag [#allocation5], %s783
          %s785 = sand.u32 %s303, 1
          %s786 = smul.addr %s785, 4
          %s787 = scalar_lea.vmem [#allocation6], %s786
          %788 = dma.done %s784, 64
        $region76: #{tpu_custom_call.1} parent=63 // pred_fallthru
          _
      $region64: #{tpu_custom_call.1} parent=5 // pred_fallthru
        _
    $region6: #{tpu_custom_call.1} parent=1 // loop_footer
      %s26 = sadd.s32 1, %s22
    $region7: #{tpu_custom_call.1} parent=1 // loop_footer_branch
      %21 = sbr.rel target = $region3
    $region8: #{tpu_custom_call.1} parent=1 // loop_exit
      _
    %789 = vsyncpa [#allocation3], 1
    %s790 = scalar_lea.sflag [#allocation3], 1
    %791 = vsyncpa %s790, 1
    %792 = vsyncpa [#allocation5], 1
    %s793 = scalar_lea.sflag [#allocation5], 1
    %794 = vsyncpa %s793, 1

</llo_original>
